<compile_context>
chip_gen: v6e
topology: v6e:2x2x1
jax: 0.10.0
libtpu: 0.0.40
codegen_flags: <defaults>
</compile_context>

<pallas_src>
import functools

import jax
import jax.numpy as jnp
from jax.experimental import pallas as pl
from jax.experimental.pallas import tpu as pltpu


def _round_up(x, m):
    return (x + m - 1) // m * m


def _block_spec(shape, index_map, buffers=None):
    """BlockSpec with optional explicit buffer depth (falls back if unsupported)."""
    if buffers is not None:
        try:
            return pl.BlockSpec(shape, index_map, pipeline_mode=pl.Buffered(buffers))
        except Exception:  # older jax without pipeline_mode kwarg
            pass
    return pl.BlockSpec(shape, index_map)


def _choose_tile(B, tile_b):
    """Pick the batch tile: big (mem-bound), multiple of 16, >=2 grid steps
    when the batch is large enough (so v7x's second TensorCore is used)."""
    full = _round_up(B, 8)
    tb = max(16, min(_round_up(tile_b, 16), _round_up(B, 16)))
    if tb >= full:
        # Whole batch fits in one tile.
        if full >= 32:
            tb = _round_up(full // 2, 16)   # split so the parallel axis has 2 steps
        else:
            tb = full                        # single full-array tile (tiny batch)
    Bp = _round_up(B, tb)
    return tb, Bp


def generator_kernel(x_ref, w1_ref, b1_ref, w2_ref, b2_ref, w3_ref, b3_ref,
                     o_ref):
    # fc1 + relu  (bf16 MXU inputs, f32 accumulation / elementwise)
    x = x_ref[...].astype(w1_ref.dtype)
    h1 = jnp.dot(x, w1_ref[...], preferred_element_type=jnp.float32)
    h1 = jnp.maximum(h1 + b1_ref[...], 0.0)

    # fc2 + relu
    h2 = jnp.dot(h1.astype(w2_ref.dtype), w2_ref[...],
                 preferred_element_type=jnp.float32)
    h2 = jnp.maximum(h2 + b2_ref[...], 0.0)

    # fc3
    z = jnp.dot(h2.astype(w3_ref.dtype), w3_ref[...],
                preferred_element_type=jnp.float32)
    z = z + b3_ref[...]

    # F.normalize(z, p=2, dim=1) == z / max(||z||, 1e-12)
    # rsqrt(max(sq, eps^2)) == 1 / max(||z||, eps) (sqrt is monotone);
    # rsqrt runs on the EUP slot (essentially free).
    sq_norm = jnp.sum(z * z, axis=1, keepdims=True)
    inv_norm = jax.lax.rsqrt(jnp.maximum(sq_norm, 1e-24))
    o_ref[...] = (z * inv_norm).astype(o_ref.dtype)


def generator_forward(x, params, *, tile_b=1024, out_dtype=jnp.bfloat16,
                      interpret=False):
    """x: (B, seed_dim) f32; params: (w1,b1,w2,b2,w3,b3), weights (in, out)."""
    w1, b1, w2, b2, w3, b3 = params
    B, S = x.shape
    H = w3.shape[1]

    tb, Bp = _choose_tile(B, tile_b)
    n_tiles = Bp // tb

    # Only the batch dim is (row-)padded; features stay unpadded -> minimum
    # HBM bytes in this mem-bound regime.  x keeps its f32 dtype (single HBM
    # pass; cast to bf16 happens in-kernel).
    xp = x if Bp == B else jnp.pad(x, ((0, Bp - B), (0, 0)))

    # bf16 weights for the MXU (halves resident bytes); f32 biases.
    w1b = w1.astype(jnp.bfloat16)
    w2b = w2.astype(jnp.bfloat16)
    w3b = w3.astype(jnp.bfloat16)
    b1f = b1.reshape(1, H).astype(jnp.float32)
    b2f = b2.reshape(1, H).astype(jnp.float32)
    b3f = b3.reshape(1, H).astype(jnp.float32)

    # Resident (constant index_map) blocks: single-buffered.
    def resident(shape):
        return _block_spec(shape, lambda i, _n=len(shape): (0,) * _n, buffers=1)

    # VMEM budget: double-buffered x/out windows + single-buffered resident
    # weights/biases + f32 temporaries (vregs pad the lane dim to 128).
    Hl = max(H, 128)
    vmem_bytes = (
        2 * tb * S * 4                 # x windows (f32, 2 buffers)
        + 2 * tb * H * 2               # out windows (bf16, 2 buffers)
        + (S * H + 2 * H * H) * 2      # weights (bf16, resident, 1 buffer)
        + 3 * H * 4                    # biases (f32, resident)
        + 4 * tb * Hl * 4              # h1/h2/z temporaries + slack
    )
    # Cap leaves headroom under v7x's 64 MiB VMEM; v5e/v6e (128 MiB) are fine.
    vmem_limit = int(min(48 << 20, max(16 << 20, 2 * vmem_bytes)))

    cost = pl.CostEstimate(
        flops=2 * Bp * (S * H + 2 * H * H),
        transcendentals=Bp,
        bytes_accessed=(Bp * S * 4 + (S * H + 2 * H * H) * 2 + 3 * H * 4
                        + Bp * H * 2),
    )

    out = pl.pallas_call(
        generator_kernel,
        out_shape=jax.ShapeDtypeStruct((Bp, H), out_dtype),
        grid=(n_tiles,),
        in_specs=[
            # TODO(synk): on v5e, if profiling shows exposed DMA between grid
            # steps, deepen this to pl.Buffered(3).
            pl.BlockSpec((tb, S), lambda i: (i, 0)),    # x: batch-tiled
            resident((S, H)), resident((1, H)),         # w1, b1
            resident((H, H)), resident((1, H)),         # w2, b2
            resident((H, H)), resident((1, H)),         # w3, b3
        ],
        out_specs=pl.BlockSpec((tb, H), lambda i: (i, 0)),
        compiler_params=pltpu.CompilerParams(
            dimension_semantics=("parallel",),
            vmem_limit_bytes=vmem_limit,
        ),
        cost_estimate=cost,
        interpret=interpret,
    )(xp, w1b, b1f, w2b, b2f, w3b, b3f)

    # Slice away batch padding only (feature dim was never padded).
    return out[:B] if Bp != B else out


def init_params(key, seed_dim, hidden_dim):
    """Shapes match the PyTorch module: xavier_normal_ weights, normal_ biases."""
    ks = jax.random.split(key, 6)

    def xavier_normal(k, fan_in, fan_out):
        std = (2.0 / (fan_in + fan_out)) ** 0.5
        return std * jax.random.normal(k, (fan_in, fan_out), jnp.float32)

    w1 = xavier_normal(ks[0], seed_dim, hidden_dim)
    b1 = jax.random.normal(ks[1], (1, hidden_dim), jnp.float32)
    w2 = xavier_normal(ks[2], hidden_dim, hidden_dim)
    b2 = jax.random.normal(ks[3], (1, hidden_dim), jnp.float32)
    w3 = xavier_normal(ks[4], hidden_dim, hidden_dim)
    b3 = jax.random.normal(ks[5], (1, hidden_dim), jnp.float32)
    return (w1, b1, w2, b2, w3, b3)


def reference_forward(x, params):
    """Plain-JAX f32 reference of the PyTorch forward."""
    w1, b1, w2, b2, w3, b3 = params
    h1 = jnp.maximum(x @ w1 + b1, 0.0)
    h2 = jnp.maximum(h1 @ w2 + b2, 0.0)
    z = h2 @ w3 + b3
    norm = jnp.sqrt(jnp.sum(z * z, axis=1, keepdims=True))
    return z / jnp.maximum(norm, 1e-12)


if __name__ == "__main__":
    key = jax.random.PRNGKey(0)
    k_param, k_x = jax.random.split(key)

    seed_dim = 16
    hidden_dim = 32
    batch = 8

    params = init_params(k_param, seed_dim, hidden_dim)
    S0 = jax.random.normal(k_x, (batch, seed_dim), jnp.float32)

    fwd = jax.jit(functools.partial(generator_forward, tile_b=1024))
    Zgen = fwd(S0, params)
    Zgen = jax.block_until_ready(Zgen)

    # Correctness vs plain-JAX f32 reference.  Kernel uses bf16 MXU inputs,
    # f32 accumulation/elementwise and a bf16 output -> small, bounded
    # deviation on the L2-normalized outputs (not bitwise parity with f32).
    Zgen_f32 = Zgen.astype(jnp.float32)
    Zref = reference_forward(S0, params)
    assert Zgen.shape == (batch, hidden_dim)
    assert bool(jnp.all(jnp.isfinite(Zgen_f32)))
    assert jnp.allclose(Zgen_f32, Zref, atol=2e-2, rtol=2e-2), "mismatch vs reference"
    # Output rows are (approximately, bf16-quantized) unit-norm.
    row_norms = jnp.sqrt(jnp.sum(Zgen_f32 * Zgen_f32, axis=1))
    assert jnp.allclose(row_norms, 1.0, atol=1e-2), "rows not L2-normalized"

    print("KERNEL_OK")
</pallas_src>

<mosaic_0001>
module attributes {stable_mosaic.version = 11 : i64} {
  func.func @generator_kernel(%arg0: i32, %arg1: memref<8x16xf32, #tpu.memory_space<vmem>>, %arg2: memref<16x32xbf16, #tpu.memory_space<vmem>>, %arg3: memref<1x32xf32, #tpu.memory_space<vmem>>, %arg4: memref<32x32xbf16, #tpu.memory_space<vmem>>, %arg5: memref<1x32xf32, #tpu.memory_space<vmem>>, %arg6: memref<32x32xbf16, #tpu.memory_space<vmem>>, %arg7: memref<1x32xf32, #tpu.memory_space<vmem>>, %arg8: memref<8x32xbf16, #tpu.memory_space<vmem>>) attributes {dimension_semantics = [#tpu.dimension_semantics<parallel>], iteration_bounds = array<i64: 1>, scalar_prefetch = 0 : i64, scratch_operands = 0 : i64, tpu.core_type = #tpu.core_type<tc>, window_params = [{transform_indices = @transform_0, window_bounds = array<i64: 8, 16>}, {pipeline_mode = #tpu.pipeline_mode<synchronous>, transform_indices = @transform_1, window_bounds = array<i64: 16, 32>}, {pipeline_mode = #tpu.pipeline_mode<synchronous>, transform_indices = @transform_2, window_bounds = array<i64: 1, 32>}, {pipeline_mode = #tpu.pipeline_mode<synchronous>, transform_indices = @transform_3, window_bounds = array<i64: 32, 32>}, {pipeline_mode = #tpu.pipeline_mode<synchronous>, transform_indices = @transform_4, window_bounds = array<i64: 1, 32>}, {pipeline_mode = #tpu.pipeline_mode<synchronous>, transform_indices = @transform_5, window_bounds = array<i64: 32, 32>}, {pipeline_mode = #tpu.pipeline_mode<synchronous>, transform_indices = @transform_6, window_bounds = array<i64: 1, 32>}, {transform_indices = @transform_7, window_bounds = array<i64: 8, 32>}]} {
    %c0 = arith.constant 0 : index
    %c0_0 = arith.constant 0 : index
    %0 = vector.load %arg1[%c0, %c0_0] : memref<8x16xf32, #tpu.memory_space<vmem>>, vector<8x16xf32>
    %1 = arith.truncf %0 : vector<8x16xf32> to vector<8x16xbf16>
    %c0_1 = arith.constant 0 : index
    %c0_2 = arith.constant 0 : index
    %2 = vector.load %arg2[%c0_1, %c0_2] : memref<16x32xbf16, #tpu.memory_space<vmem>>, vector<16x32xbf16>
    %cst = arith.constant dense<0.000000e+00> : vector<8x32xf32>
    %3 = tpu.matmul %1, %2, %cst {dimension_numbers = #tpu.dot_dimension_numbers<[1], [0], [0], [1], [0, 0, 1, 1], [], []>} : vector<8x16xbf16>, vector<16x32xbf16>, vector<8x32xf32> -> vector<8x32xf32>
    %c0_3 = arith.constant 0 : index
    %c0_4 = arith.constant 0 : index
    %4 = vector.load %arg3[%c0_3, %c0_4] : memref<1x32xf32, #tpu.memory_space<vmem>>, vector<1x32xf32>
    %5 = vector.broadcast %4 : vector<1x32xf32> to vector<8x32xf32>
    %6 = arith.addf %3, %5 : vector<8x32xf32>
    %cst_5 = arith.constant 0.000000e+00 : f32
    %7 = vector.broadcast %cst_5 : f32 to vector<8x32xf32>
    %8 = arith.maximumf %6, %7 : vector<8x32xf32>
    %9 = arith.truncf %8 : vector<8x32xf32> to vector<8x32xbf16>
    %c0_6 = arith.constant 0 : index
    %c0_7 = arith.constant 0 : index
    %10 = vector.load %arg4[%c0_6, %c0_7] : memref<32x32xbf16, #tpu.memory_space<vmem>>, vector<32x32xbf16>
    %cst_8 = arith.constant dense<0.000000e+00> : vector<8x32xf32>
    %11 = tpu.matmul %9, %10, %cst_8 {dimension_numbers = #tpu.dot_dimension_numbers<[1], [0], [0], [1], [0, 0, 1, 1], [], []>} : vector<8x32xbf16>, vector<32x32xbf16>, vector<8x32xf32> -> vector<8x32xf32>
    %c0_9 = arith.constant 0 : index
    %c0_10 = arith.constant 0 : index
    %12 = vector.load %arg5[%c0_9, %c0_10] : memref<1x32xf32, #tpu.memory_space<vmem>>, vector<1x32xf32>
    %13 = vector.broadcast %12 : vector<1x32xf32> to vector<8x32xf32>
    %14 = arith.addf %11, %13 : vector<8x32xf32>
    %cst_11 = arith.constant 0.000000e+00 : f32
    %15 = vector.broadcast %cst_11 : f32 to vector<8x32xf32>
    %16 = arith.maximumf %14, %15 : vector<8x32xf32>
    %17 = arith.truncf %16 : vector<8x32xf32> to vector<8x32xbf16>
    %c0_12 = arith.constant 0 : index
    %c0_13 = arith.constant 0 : index
    %18 = vector.load %arg6[%c0_12, %c0_13] : memref<32x32xbf16, #tpu.memory_space<vmem>>, vector<32x32xbf16>
    %cst_14 = arith.constant dense<0.000000e+00> : vector<8x32xf32>
    %19 = tpu.matmul %17, %18, %cst_14 {dimension_numbers = #tpu.dot_dimension_numbers<[1], [0], [0], [1], [0, 0, 1, 1], [], []>} : vector<8x32xbf16>, vector<32x32xbf16>, vector<8x32xf32> -> vector<8x32xf32>
    %c0_15 = arith.constant 0 : index
    %c0_16 = arith.constant 0 : index
    %20 = vector.load %arg7[%c0_15, %c0_16] : memref<1x32xf32, #tpu.memory_space<vmem>>, vector<1x32xf32>
    %21 = vector.broadcast %20 : vector<1x32xf32> to vector<8x32xf32>
    %22 = arith.addf %19, %21 : vector<8x32xf32>
    %23 = arith.mulf %22, %22 : vector<8x32xf32>
    %cst_17 = arith.constant dense<0.000000e+00> : vector<8xf32>
    %24 = vector.multi_reduction <add>, %23, %cst_17 [1] : vector<8x32xf32> to vector<8xf32>
    %25 = vector.shape_cast %24 : vector<8xf32> to vector<8x1xf32>
    %cst_18 = arith.constant 1.000000e-24 : f32
    %26 = vector.broadcast %cst_18 : f32 to vector<8x1xf32>
    %27 = arith.maximumf %25, %26 : vector<8x1xf32>
    %28 = math.rsqrt %27 : vector<8x1xf32>
    %29 = vector.broadcast %28 : vector<8x1xf32> to vector<8x32xf32>
    %30 = arith.mulf %22, %29 : vector<8x32xf32>
    %31 = arith.truncf %30 : vector<8x32xf32> to vector<8x32xbf16>
    %c0_19 = arith.constant 0 : index
    %c0_20 = arith.constant 0 : index
    %32 = vector.load %arg8[%c0_19, %c0_20] : memref<8x32xbf16, #tpu.memory_space<vmem>>, vector<8x32xbf16>
    tpu.vector_store %arg8[%c0_19, %c0_20], %31 {strides = array<i32>} : memref<8x32xbf16, #tpu.memory_space<vmem>>, vector<8x32xbf16>,
    return
  }
  func.func @transform_0(%arg0: i32) -> (i32, i32) {
    %c0_i32 = arith.constant 0 : i32
    %c0_i32_0 = arith.constant 0 : i32
    return %arg0, %c0_i32 : i32, i32
  }
  func.func @transform_1(%arg0: i32) -> (i32, i32) {
    %c0_i32 = arith.constant 0 : i32
    %c0_i32_0 = arith.constant 0 : i32
    %c0_i32_1 = arith.constant 0 : i32
    return %c0_i32, %c0_i32_0 : i32, i32
  }
  func.func @transform_2(%arg0: i32) -> (i32, i32) {
    %c0_i32 = arith.constant 0 : i32
    %c0_i32_0 = arith.constant 0 : i32
    %c0_i32_1 = arith.constant 0 : i32
    return %c0_i32, %c0_i32_0 : i32, i32
  }
  func.func @transform_3(%arg0: i32) -> (i32, i32) {
    %c0_i32 = arith.constant 0 : i32
    %c0_i32_0 = arith.constant 0 : i32
    %c0_i32_1 = arith.constant 0 : i32
    return %c0_i32, %c0_i32_0 : i32, i32
  }
  func.func @transform_4(%arg0: i32) -> (i32, i32) {
    %c0_i32 = arith.constant 0 : i32
    %c0_i32_0 = arith.constant 0 : i32
    %c0_i32_1 = arith.constant 0 : i32
    return %c0_i32, %c0_i32_0 : i32, i32
  }
  func.func @transform_5(%arg0: i32) -> (i32, i32) {
    %c0_i32 = arith.constant 0 : i32
    %c0_i32_0 = arith.constant 0 : i32
    %c0_i32_1 = arith.constant 0 : i32
    return %c0_i32, %c0_i32_0 : i32, i32
  }
  func.func @transform_6(%arg0: i32) -> (i32, i32) {
    %c0_i32 = arith.constant 0 : i32
    %c0_i32_0 = arith.constant 0 : i32
    %c0_i32_1 = arith.constant 0 : i32
    return %c0_i32, %c0_i32_0 : i32, i32
  }
  func.func @transform_7(%arg0: i32) -> (i32, i32) {
    %c0_i32 = arith.constant 0 : i32
    %c0_i32_0 = arith.constant 0 : i32
    return %arg0, %c0_i32 : i32, i32
  }
}

</mosaic_0001>

<llo_original>
// kernel: generator_forward.1
$region0: #{generator_forward.1}
  #allocation0 [shape = 'u32[]', space=smem, size = 0x4, offset = 0x4, fixed_abs, tag = 'smem constant byte address 0x4 - core index']
  #allocation1 [shape = 'u32[144,128]{1,0:T(1,128)}', space=vmem, size = 0x12000, scoped, tag = 'internal scratch']
  %s0 = inlined_call_operand.vmem [shape: f32[8,16], index: 0, kind: input, shape index: {}]
  %s1 = inlined_call_operand.vmem [shape: bf16[16,32], index: 1, kind: input, shape index: {}]
  %s2 = inlined_call_operand.vmem [shape: f32[1,32], index: 2, kind: input, shape index: {}]
  %s3 = inlined_call_operand.vmem [shape: bf16[32,32], index: 3, kind: input, shape index: {}]
  %s4 = inlined_call_operand.vmem [shape: f32[1,32], index: 4, kind: input, shape index: {}]
  %s5 = inlined_call_operand.vmem [shape: bf16[32,32], index: 5, kind: input, shape index: {}]
  %s6 = inlined_call_operand.vmem [shape: f32[1,32], index: 6, kind: input, shape index: {}]
  %s7 = inlined_call_operand.hbm [shape: bf16[8,32], index: 7, kind: output, shape index: {}]
  %s8 = sld [smem:[#allocation0]]
  $region38: #{generator_forward.1} parent=0
    _
  %s10 = ssub.s32 1, %s8
  %s11 = scalar_select 0, %s10, %s8
  $region1: #{generator_forward.1} parent=0
    #allocation2 [shape = 'u8[2048]{0}', space=vmem, size = 0x800, scoped, tag = 'output window, operand 0, single buffered']
    #allocation3 [shape = 's32[1]{0}', space=sflag, size = 0x4, scoped, tag = 'scoped memory for generator_forward.1']
    %12 = vsyncpa [#allocation3], 0
    // Predicated region
    $region2: #{generator_forward.1} parent=1 // pred_check
      _
    $region3: #{generator_forward.1} parent=1 // pred_check_branch
      %14 = sbr.rel (0) target = $region5
    $region4: #{generator_forward.1} parent=1 // pred_region
      _
    $region5: #{generator_forward.1} parent=1 // pred_fallthru
      _
    // Predicated region
    $region6: #{generator_forward.1} parent=1 // pred_check
      _
    $region7: #{generator_forward.1} parent=1 // pred_check_branch
      %16 = sbr.rel (0) target = $region9
    $region8: #{generator_forward.1} parent=1 // pred_region
      _
    $region9: #{generator_forward.1} parent=1 // pred_fallthru
      _
    // Predicated region
    $region10: #{generator_forward.1} parent=1 // pred_check
      _
    $region11: #{generator_forward.1} parent=1 // pred_check_branch
      %18 = sbr.rel (0) target = $region13
    $region12: #{generator_forward.1} parent=1 // pred_region
      _
    $region13: #{generator_forward.1} parent=1 // pred_fallthru
      _
    // Predicated region
    $region14: #{generator_forward.1} parent=1 // pred_check
      _
    $region15: #{generator_forward.1} parent=1 // pred_check_branch
      %20 = sbr.rel (0) target = $region17
    $region16: #{generator_forward.1} parent=1 // pred_region
      _
    $region17: #{generator_forward.1} parent=1 // pred_fallthru
      _
    // Predicated region
    $region18: #{generator_forward.1} parent=1 // pred_check
      _
    $region19: #{generator_forward.1} parent=1 // pred_check_branch
      %22 = sbr.rel (0) target = $region21
    $region20: #{generator_forward.1} parent=1 // pred_region
      _
    $region21: #{generator_forward.1} parent=1 // pred_fallthru
      _
    // Predicated region
    $region22: #{generator_forward.1} parent=1 // pred_check
      _
    $region23: #{generator_forward.1} parent=1 // pred_check_branch
      %24 = sbr.rel (0) target = $region25
    $region24: #{generator_forward.1} parent=1 // pred_region
      _
    $region25: #{generator_forward.1} parent=1 // pred_fallthru
      _
    // Predicated region
    $region26: #{generator_forward.1} parent=1 // pred_check
      _
    $region27: #{generator_forward.1} parent=1 // pred_check_branch
      %26 = sbr.rel (0) target = $region29
    $region28: #{generator_forward.1} parent=1 // pred_region
      _
    $region29: #{generator_forward.1} parent=1 // pred_fallthru
      _
    %v28 = vld [vmem:[%s0] sm:$0xff]
    %v29 = vpack.c.bf16 %v28, %v28
    %v30 = vld [vmem:[%s1] sm:$0xf]
    %v31 = vld [vmem:[%s1 + $0x4] sm:$0xf]
    %v32 = vld [vmem:[%s2] sm:$0x1]
    %v34 = vlaneseq
    %v35 = vshrl.u32 %v34, 7
    %v36 = vsub.s32 0, %v35
    %v37 = vrot.slane %v32, %v36
    %v41 = vunpack.c.l.b16 %v30
    %v42 = vunpack.c.l.b16 %v31
    %v43 = vpack.c.b16 %v42, %v41
    %vm45 = vcmask 130048
    %v47 = vsel %vm45, %v29, 0
    %49 = vmatprep.subr.bf16.mxu0 0
    %50 = vmatpush1.bf16.msra.mxu0 0
    %51 = vmatprep.subr.bf16.mxu0 0
    %52 = vmatpush1.bf16.msra.mxu0 0
    %53 = vmatprep.subr.bf16.mxu0 0
    %54 = vmatpush1.bf16.msra.mxu0 0
    %55 = vmatprep.subr.bf16.mxu0 0
    %56 = vmatpush1.bf16.msra.mxu0 0
    %57 = vmatprep.subr.bf16.mxu0 0
    %58 = vmatpush1.bf16.msra.mxu0 0
    %59 = vmatprep.subr.bf16.mxu0 0
    %60 = vmatpush1.bf16.msra.mxu0 0
    %61 = vmatprep.subr.bf16.mxu0 0
    %62 = vmatpush1.bf16.msra.mxu0 0
    %63 = vmatprep.subr.bf16.mxu0 0
    %64 = vmatpush1.bf16.msra.mxu0 %v43
    %65 = vmatprep.subr.bf16.mxu0 0
    %66 = vmatpush2.bf16.msra.mxu0 0
    %67 = vmatprep.subr.bf16.mxu0 0
    %68 = vmatpush2.bf16.msra.mxu0 0
    %69 = vmatprep.subr.bf16.mxu0 0
    %70 = vmatpush2.bf16.msra.mxu0 0
    %71 = vmatprep.subr.bf16.mxu0 0
    %72 = vmatpush2.bf16.msra.mxu0 0
    %73 = vmatprep.subr.bf16.mxu0 0
    %74 = vmatpush2.bf16.msra.mxu0 0
    %75 = vmatprep.subr.bf16.mxu0 0
    %76 = vmatpush2.bf16.msra.mxu0 0
    %77 = vmatprep.subr.bf16.mxu0 0
    %78 = vmatpush2.bf16.msra.mxu0 0
    %79 = vmatprep.subr.bf16.mxu0 0
    %80 = vmatpush2.bf16.msra.mxu0 0
    %81 = vmatprep.mubr.bf16.mxu0 0
    %82 = vmatmul.mubr.bf16.gmra.mxu0 %v47
    %v83 = vpop.f32.mrf.mxu0
    %v84 = vadd.f32 %v37, %v83
    %v85 = vpop.f32.mrf.mxu0
    %v86 = vpop.f32.mrf.mxu0
    %v87 = vpop.f32.mrf.mxu0
    %88 = vdwg.mxu0
    %v89 = vmax.f32 %v84, 0.0
    %v90 = vpack.c.bf16 %v89, %v89
    %v91 = vld [vmem:[%s3] sm:$0xf]
    %v92 = vld [vmem:[%s3 + $0x4] sm:$0xf]
    %v93 = vld [vmem:[%s3 + $0x8] sm:$0xf]
    %v94 = vld [vmem:[%s3 + $0xc] sm:$0xf]
    %v95 = vld [vmem:[%s4] sm:$0x1]
    %v97 = vlaneseq
    %v98 = vshrl.u32 %v97, 7
    %v99 = vsub.s32 0, %v98
    %v100 = vrot.slane %v95, %v99
    %v106 = vunpack.c.l.b16 %v91
    %v107 = vunpack.c.l.b16 %v92
    %v108 = vunpack.c.l.b16 %v93
    %v109 = vunpack.c.l.b16 %v94
    %v110 = vpack.c.b16 %v107, %v106
    %v111 = vpack.c.b16 %v109, %v108
    %vm114 = vcmask 261120
    %v116 = vsel %vm114, %v90, 0
    %118 = vmatprep.subr.bf16.mxu0 0
    %119 = vmatpush1.bf16.msra.mxu0 0
    %120 = vmatprep.subr.bf16.mxu0 0
    %121 = vmatpush1.bf16.msra.mxu0 0
    %122 = vmatprep.subr.bf16.mxu0 0
    %123 = vmatpush1.bf16.msra.mxu0 0
    %124 = vmatprep.subr.bf16.mxu0 0
    %125 = vmatpush1.bf16.msra.mxu0 0
    %126 = vmatprep.subr.bf16.mxu0 0
    %127 = vmatpush1.bf16.msra.mxu0 0
    %128 = vmatprep.subr.bf16.mxu0 0
    %129 = vmatpush1.bf16.msra.mxu0 0
    %130 = vmatprep.subr.bf16.mxu0 0
    %131 = vmatpush1.bf16.msra.mxu0 %v111
    %132 = vmatprep.subr.bf16.mxu0 0
    %133 = vmatpush1.bf16.msra.mxu0 %v110
    %134 = vmatprep.subr.bf16.mxu0 0
    %135 = vmatpush2.bf16.msra.mxu0 0
    %136 = vmatprep.subr.bf16.mxu0 0
    %137 = vmatpush2.bf16.msra.mxu0 0
    %138 = vmatprep.subr.bf16.mxu0 0
    %139 = vmatpush2.bf16.msra.mxu0 0
    %140 = vmatprep.subr.bf16.mxu0 0
    %141 = vmatpush2.bf16.msra.mxu0 0
    %142 = vmatprep.subr.bf16.mxu0 0
    %143 = vmatpush2.bf16.msra.mxu0 0
    %144 = vmatprep.subr.bf16.mxu0 0
    %145 = vmatpush2.bf16.msra.mxu0 0
    %146 = vmatprep.subr.bf16.mxu0 0
    %147 = vmatpush2.bf16.msra.mxu0 0
    %148 = vmatprep.subr.bf16.mxu0 0
    %149 = vmatpush2.bf16.msra.mxu0 0
    %150 = vmatprep.mubr.bf16.mxu0 0
    %151 = vmatmul.mubr.bf16.gmra.mxu0 %v116
    %v152 = vpop.f32.mrf.mxu0
    %v153 = vadd.f32 %v100, %v152
    %v154 = vpop.f32.mrf.mxu0
    %v155 = vpop.f32.mrf.mxu0
    %v156 = vpop.f32.mrf.mxu0
    %157 = vdwg.mxu0
    %v158 = vmax.f32 %v153, 0.0
    %v159 = vpack.c.bf16 %v158, %v158
    %v160 = vld [vmem:[%s5] sm:$0xf]
    %v161 = vld [vmem:[%s5 + $0x4] sm:$0xf]
    %v162 = vld [vmem:[%s5 + $0x8] sm:$0xf]
    %v163 = vld [vmem:[%s5 + $0xc] sm:$0xf]
    %v164 = vld [vmem:[%s6] sm:$0x1]
    %v166 = vlaneseq
    %v167 = vshrl.u32 %v166, 7
    %v168 = vsub.s32 0, %v167
    %v169 = vrot.slane %v164, %v168
    %v175 = vunpack.c.l.b16 %v160
    %v176 = vunpack.c.l.b16 %v161
    %v177 = vunpack.c.l.b16 %v162
    %v178 = vunpack.c.l.b16 %v163
    %v179 = vpack.c.b16 %v176, %v175
    %v180 = vpack.c.b16 %v178, %v177
    %v184 = vsel %vm114, %v159, 0
    %186 = vmatprep.subr.bf16.mxu0 0
    %187 = vmatpush1.bf16.msra.mxu0 0
    %188 = vmatprep.subr.bf16.mxu0 0
    %189 = vmatpush1.bf16.msra.mxu0 0
    %190 = vmatprep.subr.bf16.mxu0 0
    %191 = vmatpush1.bf16.msra.mxu0 0
    %192 = vmatprep.subr.bf16.mxu0 0
    %193 = vmatpush1.bf16.msra.mxu0 0
    %194 = vmatprep.subr.bf16.mxu0 0
    %195 = vmatpush1.bf16.msra.mxu0 0
    %196 = vmatprep.subr.bf16.mxu0 0
    %197 = vmatpush1.bf16.msra.mxu0 0
    %198 = vmatprep.subr.bf16.mxu0 0
    %199 = vmatpush1.bf16.msra.mxu0 %v180
    %200 = vmatprep.subr.bf16.mxu0 0
    %201 = vmatpush1.bf16.msra.mxu0 %v179
    %202 = vmatprep.subr.bf16.mxu0 0
    %203 = vmatpush2.bf16.msra.mxu0 0
    %204 = vmatprep.subr.bf16.mxu0 0
    %205 = vmatpush2.bf16.msra.mxu0 0
    %206 = vmatprep.subr.bf16.mxu0 0
    %207 = vmatpush2.bf16.msra.mxu0 0
    %208 = vmatprep.subr.bf16.mxu0 0
    %209 = vmatpush2.bf16.msra.mxu0 0
    %210 = vmatprep.subr.bf16.mxu0 0
    %211 = vmatpush2.bf16.msra.mxu0 0
    %212 = vmatprep.subr.bf16.mxu0 0
    %213 = vmatpush2.bf16.msra.mxu0 0
    %214 = vmatprep.subr.bf16.mxu0 0
    %215 = vmatpush2.bf16.msra.mxu0 0
    %216 = vmatprep.subr.bf16.mxu0 0
    %217 = vmatpush2.bf16.msra.mxu0 0
    %218 = vmatprep.mubr.bf16.mxu0 0
    %219 = vmatmul.mubr.bf16.gmra.mxu0 %v184
    %v220 = vpop.f32.mrf.mxu0
    %v221 = vadd.f32 %v169, %v220
    %v222 = vpop.f32.mrf.mxu0
    %v223 = vpop.f32.mrf.mxu0
    %v224 = vpop.f32.mrf.mxu0
    %225 = vdwg.mxu0
    %v226 = vmul.f32 %v221, %v221
    %v227 = vsel %vm114, %v226, 0.0
    %228 = vadd.xlane.f32.xlu0 %v227
    %v229 = vpop.xlane.xlu0 %228
    %v230 = vmax.f32 %v229, 1e-24
    %v231 = vrsqrt.pop %v230
    %v232 = vmul.f32 %v221, %v231
    %v233 = vpack.c.bf16 %v232, %v232
    %vm234 = vcmask 257024
    %235 = vst.msk [vmem:[#allocation2] sm:$0xf] %vm234, %v233
    // Predicated region
    $region30: #{generator_forward.1} parent=1 // pred_check
      _
    $region31: #{generator_forward.1} parent=1 // pred_check_branch
      %237 = sbr.rel (0) target = $region33
    $region32: #{generator_forward.1} parent=1 // pred_region
      %s239 = ssub.s32 64, 64
      %240 = vsyncadd [#allocation3], %s239
      %s242 = sshll.u32 [#allocation2], 4
      %s243 = int_to_ptr.vmem [resolvable:$true] %s242
      %245 = dma.vmem_to_hbm [thread:$0]  %s243, 64, %s7, [#allocation3]
    $region33: #{generator_forward.1} parent=1 // pred_fallthru
      _
    // Predicated region
    $region34: #{generator_forward.1} parent=1 // pred_check
      _
    $region35: #{generator_forward.1} parent=1 // pred_check_branch
      %247 = sbr.rel (0) target = $region37
    $region36: #{generator_forward.1} parent=1 // pred_region
      %248 = dma.done [#allocation3], 64
    $region37: #{generator_forward.1} parent=1 // pred_fallthru
      _
    %249 = vsyncpa [#allocation3], 1

</llo_original>
